<compile_context>
chip_gen: v5e
topology: v5e:2x2
jax: 0.10.0
libtpu: 0.0.40
codegen_flags: <defaults>
</compile_context>

<pallas_src>
import functools

import jax
import jax.numpy as jnp
from jax.experimental import pallas as pl
from jax.experimental.pallas import tpu as pltpu


# ----------------------------- chip configuration --------------------------- #

def _chip_config():
    kind = ""
    try:
        kind = jax.devices()[0].device_kind.lower()
    except Exception:
        pass
    vmem_cap = None
    try:
        vmem_cap = int(pltpu.get_tpu_info().vmem_capacity_bytes)
    except Exception:
        pass
    mib = 1024 * 1024
    # bf16 EUP exists on v6e / v7x only (v5e has no bf16 transcendentals).
    bf16_exp = any(t in kind for t in ("v6", "6e", "v7", "7x"))
    if (vmem_cap is not None and vmem_cap >= 128 * mib) or any(
            t in kind for t in ("v5", "v6", "6e")):
        # 128 MiB physical VMEM: keep MLP weights resident, bigger row tiles.
        return dict(vmem_limit=100 * mib, row_tile=512, bf16_exp=bf16_exp)
    if (vmem_cap is not None and vmem_cap <= 64 * mib) or any(
            t in kind for t in ("v7", "7x")):
        # v7x: 64 MiB per TensorCore -> stay well under it.
        return dict(vmem_limit=48 * mib, row_tile=256, bf16_exp=bf16_exp)
    # Unknown chip: leave the compiler's default scoped-VMEM limit alone.
    return dict(vmem_limit=None, row_tile=256, bf16_exp=bf16_exp)


def _cparams(sems, vmem_limit):
    kw = dict(dimension_semantics=sems)
    if vmem_limit is not None:
        kw["vmem_limit_bytes"] = int(vmem_limit)
    return pltpu.CompilerParams(**kw)


def _pick_seq_tile(n, target=256):
    if n <= target:
        return n
    t = target
    while t >= 8:
        if n % t == 0:
            return t
        t -= 8
    return n   # TODO(synk): masked trailing tiles for ragged N (e.g. 729)


def _pick_k_tile(hm, target=1024):
    if hm <= target:
        return hm
    t = (target // 128) * 128
    while t >= 128:
        if hm % t == 0:
            return t
        t -= 128
    return hm  # TODO(synk): pad HM=4304 to a multiple of 128 for production


def _gelu_tanh(x):
    # tanh approximation of GELU (matches F.gelu(x, approximate='tanh'))
    c = 0.7978845608028654  # sqrt(2/pi)
    return 0.5 * x * (1.0 + jnp.tanh(c * (x + 0.044715 * x * x * x)))


# --------------------------- fused QKV projection --------------------------- #

def _qkv_kernel(x_ref, w_ref, b_ref, q_ref, k_ref, v_ref, *, d_model):
    x = x_ref[...].astype(jnp.bfloat16)
    y = jnp.dot(x, w_ref[...], preferred_element_type=jnp.float32) + b_ref[...]
    y = y.astype(jnp.bfloat16)
    q_ref[...] = y[:, :d_model]
    k_ref[...] = y[:, d_model:2 * d_model]
    v_ref[...] = y[:, 2 * d_model:]


def qkv_proj(x2d, wqkv_t, bqkv, *, tm, vmem_limit):
    M, D = x2d.shape
    row = pl.BlockSpec((tm, D), lambda i: (i, 0))
    return pl.pallas_call(
        functools.partial(_qkv_kernel, d_model=D),
        grid=(pl.cdiv(M, tm),),
        out_shape=[jax.ShapeDtypeStruct((M, D), jnp.bfloat16)] * 3,
        in_specs=[row,
                  pl.BlockSpec(wqkv_t.shape, lambda i: (0, 0)),
                  pl.BlockSpec(bqkv.shape, lambda i: (0, 0))],
        out_specs=[row] * 3,
        compiler_params=_cparams(("parallel",), vmem_limit),
    )(x2d, wqkv_t, bqkv)


# ------- flash attention + head-merge + out_proj + LayerNorm1 + residual ---- #

def _flash_attn_outproj_kernel(q_ref, k_ref, v_ref, x_ref, wo_ref, bo_ref,
                               g_ref, bb_ref, o_ref, m_scr, l_scr, acc_scr,
                               *, scale, eps, num_heads, use_bf16_exp):
    ki = pl.program_id(2)

    @pl.when(ki == 0)
    def _():
        m_scr[...] = jnp.full_like(m_scr, -jnp.inf)
        l_scr[...] = jnp.zeros_like(l_scr)
        acc_scr[...] = jnp.zeros_like(acc_scr)

    q = q_ref[0]                                   # (H, tq, hd)  bf16
    k = k_ref[0]                                   # (H, tkv, hd) bf16
    v = v_ref[0]                                   # (H, tkv, hd) bf16

    s = jnp.einsum("hqd,hkd->hqk", q, k,
                   preferred_element_type=jnp.float32) * scale   # (H,tq,tkv)

    m_prev = m_scr[...]
    m_new = jnp.maximum(m_prev, jnp.max(s, axis=-1, keepdims=True))
    alpha = jnp.exp(m_prev - m_new)                # small (H,tq,1), f32

    if use_bf16_exp:                               # bf16 EUP (v6e / v7x)
        p = jnp.exp((s - m_new).astype(jnp.bfloat16))
    else:
        p = jnp.exp(s - m_new).astype(jnp.bfloat16)

    l_scr[...] = alpha * l_scr[...] + jnp.sum(
        p.astype(jnp.float32), axis=-1, keepdims=True)
    acc_scr[...] = alpha * acc_scr[...] + jnp.einsum(
        "hqk,hkd->hqd", p, v, preferred_element_type=jnp.float32)
    m_scr[...] = m_new

    @pl.when(ki == pl.num_programs(2) - 1)
    def _():
        # Deferred softmax normalization on the small (H, tq, hd) accumulator.
        o = (acc_scr[...] / l_scr[...]).astype(jnp.bfloat16)
        tq, dm = o_ref.shape[1], o_ref.shape[2]
        # Head merge fused into the out-projection: lane-dense (tq, D) result.
        y = jnp.zeros((tq, dm), jnp.float32)
        for h in range(num_heads):
            y = y + jnp.dot(o[h], wo_ref[h],
                            preferred_element_type=jnp.float32)
        y = y + bo_ref[...]
        mean = jnp.mean(y, axis=-1, keepdims=True)
        var = jnp.mean((y - mean) ** 2, axis=-1, keepdims=True)
        yn = (y - mean) * jax.lax.rsqrt(var + eps)
        o_ref[0] = (yn * g_ref[...] + bb_ref[...] + x_ref[0]).astype(o_ref.dtype)


def attention_outproj_ln_residual(q, k, v, x, wo3, bo, gamma, beta, *,
                                  scale, eps, tq, tkv, use_bf16_exp,
                                  vmem_limit):
    B, H, N, hd = q.shape
    D = H * hd
    assert N % tq == 0 and N % tkv == 0, "sequence tiles must divide N"
    grid = (B, N // tq, N // tkv)

    q_spec = pl.BlockSpec((1, H, tq, hd), lambda b, qi, ki: (b, 0, qi, 0))
    kv_spec = pl.BlockSpec((1, H, tkv, hd), lambda b, qi, ki: (b, 0, ki, 0))
    row_spec = pl.BlockSpec((1, tq, D), lambda b, qi, ki: (b, qi, 0))

    def const(shape):
        return pl.BlockSpec(shape, lambda b, qi, ki: (0,) * len(shape))

    return pl.pallas_call(
        functools.partial(_flash_attn_outproj_kernel, scale=scale, eps=eps,
                          num_heads=H, use_bf16_exp=use_bf16_exp),
        grid=grid,
        out_shape=jax.ShapeDtypeStruct((B, N, D), jnp.float32),
        in_specs=[q_spec, kv_spec, kv_spec, row_spec,
                  const(wo3.shape), const((1, D)), const((1, D)), const((1, D))],
        out_specs=row_spec,
        scratch_shapes=[pltpu.VMEM((H, tq, 1), jnp.float32),
                        pltpu.VMEM((H, tq, 1), jnp.float32),
                        pltpu.VMEM((H, tq, hd), jnp.float32)],
        compiler_params=_cparams(("parallel", "parallel", "arbitrary"),
                                 vmem_limit),
    )(q, k, v, x, wo3, bo.reshape(1, -1), gamma.reshape(1, -1),
      beta.reshape(1, -1))


# -------- MLP (gelu -> fc1 -> fc2, K-tiled) + LayerNorm2 + residual --------- #

def _mlp_ln_res_kernel(x_ref, w1_ref, b1_ref, w2_ref, b2_ref, g_ref, bb_ref,
                       o_ref, a_scr, acc_scr, *, eps):
    j = pl.program_id(1)

    @pl.when(j == 0)
    def _():
        # gelu FIRST (SiglipMLP); cache bf16 activations for all K-tiles.
        a_scr[...] = _gelu_tanh(x_ref[...]).astype(jnp.bfloat16)
        acc_scr[...] = jnp.zeros_like(acc_scr)

    h = jnp.dot(a_scr[...], w1_ref[...],
                preferred_element_type=jnp.float32) + b1_ref[...]
    acc_scr[...] += jnp.dot(h.astype(jnp.bfloat16), w2_ref[...],
                            preferred_element_type=jnp.float32)

    @pl.when(j == pl.num_programs(1) - 1)
    def _():
        u = acc_scr[...] + b2_ref[...]
        mean = jnp.mean(u, axis=-1, keepdims=True)
        var = jnp.mean((u - mean) ** 2, axis=-1, keepdims=True)
        un = (u - mean) * jax.lax.rsqrt(var + eps)
        o_ref[...] = un * g_ref[...] + bb_ref[...] + x_ref[...]


def mlp_ln_residual(x2d, w1_t, b1, w2_t, b2, gamma, beta, *, eps, tm, thm,
                    vmem_limit):
    M, D = x2d.shape
    HM = w1_t.shape[1]
    assert HM % thm == 0, "K-tile must divide the MLP hidden dim"
    row = pl.BlockSpec((tm, D), lambda i, j: (i, 0))
    const_d = lambda: pl.BlockSpec((1, D), lambda i, j: (0, 0))
    return pl.pallas_call(
        functools.partial(_mlp_ln_res_kernel, eps=eps),
        grid=(pl.cdiv(M, tm), HM // thm),
        out_shape=jax.ShapeDtypeStruct((M, D), jnp.float32),
        in_specs=[row,
                  pl.BlockSpec((D, thm), lambda i, j: (0, j)),
                  pl.BlockSpec((1, thm), lambda i, j: (0, j)),
                  pl.BlockSpec((thm, D), lambda i, j: (j, 0)),
                  const_d(), const_d(), const_d()],
        out_specs=row,
        scratch_shapes=[pltpu.VMEM((tm, D), jnp.bfloat16),
                        pltpu.VMEM((tm, D), jnp.float32)],
        compiler_params=_cparams(("parallel", "arbitrary"), vmem_limit),
    )(x2d, w1_t, b1.reshape(1, -1), w2_t, b2.reshape(1, -1),
      gamma.reshape(1, -1), beta.reshape(1, -1))


# ------------------------------ encoder layer ------------------------------- #

def siglip_encoder_layer(x, p, *, num_heads, eps, row_tile=None,
                         attn_q_tile=None, attn_kv_tile=None, mlp_k_tile=None):
    cfg = _chip_config()
    B, N, D = x.shape
    hd = D // num_heads
    M = B * N

    tm = min(M, row_tile or cfg["row_tile"])
    tq = attn_q_tile or _pick_seq_tile(N)
    tkv = attn_kv_tile or _pick_seq_tile(N)
    thm = mlp_k_tile or _pick_k_tile(p["w1_t"].shape[1])
    vmem_limit = cfg["vmem_limit"]

    x2d = x.reshape(M, D)

    # fused Q/K/V projection (one GEMM, bf16 outputs)
    q2d, k2d, v2d = qkv_proj(x2d, p["wqkv_t"], p["bqkv"], tm=tm,
                             vmem_limit=vmem_limit)

    # split_heads: raw view to (B, H, N, hd), NO transpose (as in the module)
    qf = q2d.reshape(B, num_heads, N, hd)
    kf = k2d.reshape(B, num_heads, N, hd)
    vf = v2d.reshape(B, num_heads, N, hd)

    # out_norm1 = LN1(out_proj(merge(attention(q,k,v)))) + x   (one kernel)
    out_norm1 = attention_outproj_ln_residual(
        qf, kf, vf, x, p["wo3"], p["bo"], p["ln1_g"], p["ln1_b"],
        scale=hd ** (-0.5), eps=eps, tq=tq, tkv=tkv,
        use_bf16_exp=cfg["bf16_exp"], vmem_limit=vmem_limit)

    # out = LN2(fc2(fc1(gelu(out_norm1)))) + out_norm1         (one kernel)
    out = mlp_ln_residual(out_norm1.reshape(M, D), p["w1_t"], p["b1"],
                          p["w2_t"], p["b2"], p["ln2_g"], p["ln2_b"],
                          eps=eps, tm=tm, thm=thm, vmem_limit=vmem_limit)
    return out.reshape(B, N, D)


# --------------------------- pure-JAX reference ------------------------------ #

def ref_encoder_layer(x, p, *, num_heads, eps):
    B, N, D = x.shape
    hd = D // num_heads

    def lin(z, wt, b):
        return z @ wt + b

    def ln(z, g, b):
        m = z.mean(-1, keepdims=True)
        v = ((z - m) ** 2).mean(-1, keepdims=True)
        return (z - m) / jnp.sqrt(v + eps) * g + b

    q = lin(x, p["wq_t"], p["bq"]).reshape(B, num_heads, N, hd)
    k = lin(x, p["wk_t"], p["bk"]).reshape(B, num_heads, N, hd)
    v = lin(x, p["wv_t"], p["bv"]).reshape(B, num_heads, N, hd)
    s = jnp.einsum("bhqd,bhkd->bhqk", q, k) * hd ** (-0.5)
    pw = jax.nn.softmax(s, axis=-1)
    o = jnp.einsum("bhqk,bhkd->bhqd", pw, v)
    o = jnp.transpose(o, (0, 2, 1, 3)).reshape(B, N, D)
    out_attn = lin(o, p["wo_t"], p["bo"])
    out_norm1 = ln(out_attn, p["ln1_g"], p["ln1_b"]) + x
    h = _gelu_tanh(out_norm1)
    h = lin(h, p["w1_t"], p["b1"])
    h = lin(h, p["w2_t"], p["b2"])
    return ln(h, p["ln2_g"], p["ln2_b"]) + out_norm1


# --------------------------------- main -------------------------------------- #

if __name__ == "__main__":
    # Small shapes (chosen so the flash kv loop, q-tiling, row-tiling and MLP
    # K-tiling all take >1 grid step): d_model=32, heads=4, mlp hidden=256.
    B, N, D, H, HM = 2, 16, 32, 4, 256
    EPS = 1e-6

    key = jax.random.PRNGKey(0)
    keys = jax.random.split(key, 17)

    def init(k, shape, scale=0.05):
        return scale * jax.random.normal(k, shape, jnp.float32)

    params_f32 = {
        "wq_t": init(keys[0], (D, D)), "bq": init(keys[1], (D,)),
        "wk_t": init(keys[2], (D, D)), "bk": init(keys[3], (D,)),
        "wv_t": init(keys[4], (D, D)), "bv": init(keys[5], (D,)),
        "wo_t": init(keys[6], (D, D)), "bo": init(keys[7], (D,)),
        "ln1_g": 1.0 + init(keys[8], (D,)), "ln1_b": init(keys[9], (D,)),
        "w1_t": init(keys[10], (D, HM)), "b1": init(keys[11], (HM,)),
        "w2_t": init(keys[12], (HM, D)), "b2": init(keys[13], (D,)),
        "ln2_g": 1.0 + init(keys[14], (D,)), "ln2_b": init(keys[15], (D,)),
    }
    x = jax.random.normal(keys[16], (B, N, D), jnp.float32)

    hd = D // H
    kernel_params = {
        "wqkv_t": jnp.concatenate(
            [params_f32["wq_t"], params_f32["wk_t"], params_f32["wv_t"]],
            axis=1).astype(jnp.bfloat16),
        "bqkv": jnp.concatenate(
            [params_f32["bq"], params_f32["bk"], params_f32["bv"]]
        ).reshape(1, -1),
        # out_proj weight pre-split per head for the fused head-merge GEMM.
        "wo3": params_f32["wo_t"].reshape(H, hd, D).astype(jnp.bfloat16),
        "bo": params_f32["bo"],
        "ln1_g": params_f32["ln1_g"], "ln1_b": params_f32["ln1_b"],
        "w1_t": params_f32["w1_t"].astype(jnp.bfloat16),
        "b1": params_f32["b1"],
        "w2_t": params_f32["w2_t"].astype(jnp.bfloat16),
        "b2": params_f32["b2"],
        "ln2_g": params_f32["ln2_g"], "ln2_b": params_f32["ln2_b"],
    }

    out = siglip_encoder_layer(x, kernel_params, num_heads=H, eps=EPS,
                               row_tile=16, attn_q_tile=8, attn_kv_tile=8,
                               mlp_k_tile=128)
    out = jax.block_until_ready(out)

    ref = ref_encoder_layer(x, params_f32, num_heads=H, eps=EPS)
    max_err = float(jnp.max(jnp.abs(out - ref)))
    assert out.shape == (B, N, D) and out.dtype == jnp.float32
    # bf16 MXU inputs / bf16 exp on v6e+ vs pure-f32 reference
    assert max_err < 5e-2, f"mismatch vs reference, max abs err {max_err}"

    print("KERNEL_OK")
</pallas_src>

<mosaic_0001>
module attributes {stable_mosaic.version = 11 : i64} {
  func.func @_qkv_kernel(%arg0: i32, %arg1: memref<16x32xf32, #tpu.memory_space<vmem>>, %arg2: memref<32x96xbf16, #tpu.memory_space<vmem>>, %arg3: memref<1x96xf32, #tpu.memory_space<vmem>>, %arg4: memref<16x32xbf16, #tpu.memory_space<vmem>>, %arg5: memref<16x32xbf16, #tpu.memory_space<vmem>>, %arg6: memref<16x32xbf16, #tpu.memory_space<vmem>>) attributes {dimension_semantics = [#tpu.dimension_semantics<parallel>], iteration_bounds = array<i64: 2>, scalar_prefetch = 0 : i64, scratch_operands = 0 : i64, tpu.core_type = #tpu.core_type<tc>, window_params = [{transform_indices = @transform_0, window_bounds = array<i64: 16, 32>}, {pipeline_mode = #tpu.pipeline_mode<synchronous>, transform_indices = @transform_1, window_bounds = array<i64: 32, 96>}, {pipeline_mode = #tpu.pipeline_mode<synchronous>, transform_indices = @transform_2, window_bounds = array<i64: 1, 96>}, {transform_indices = @transform_3, window_bounds = array<i64: 16, 32>}, {transform_indices = @transform_4, window_bounds = array<i64: 16, 32>}, {transform_indices = @transform_5, window_bounds = array<i64: 16, 32>}]} {
    %c0 = arith.constant 0 : index
    %c0_0 = arith.constant 0 : index
    %0 = vector.load %arg1[%c0, %c0_0] : memref<16x32xf32, #tpu.memory_space<vmem>>, vector<16x32xf32>
    %1 = arith.truncf %0 : vector<16x32xf32> to vector<16x32xbf16>
    %c0_1 = arith.constant 0 : index
    %c0_2 = arith.constant 0 : index
    %2 = vector.load %arg2[%c0_1, %c0_2] : memref<32x96xbf16, #tpu.memory_space<vmem>>, vector<32x96xbf16>
    %cst = arith.constant dense<0.000000e+00> : vector<16x96xf32>
    %3 = tpu.matmul %1, %2, %cst {dimension_numbers = #tpu.dot_dimension_numbers<[1], [0], [0], [1], [0, 0, 1, 1], [], []>} : vector<16x32xbf16>, vector<32x96xbf16>, vector<16x96xf32> -> vector<16x96xf32>
    %c0_3 = arith.constant 0 : index
    %c0_4 = arith.constant 0 : index
    %4 = vector.load %arg3[%c0_3, %c0_4] : memref<1x96xf32, #tpu.memory_space<vmem>>, vector<1x96xf32>
    %5 = vector.broadcast %4 : vector<1x96xf32> to vector<16x96xf32>
    %6 = arith.addf %3, %5 : vector<16x96xf32>
    %7 = arith.truncf %6 : vector<16x96xf32> to vector<16x96xbf16>
    %8 = vector.extract_strided_slice %7 {offsets = [0, 0], sizes = [16, 32], strides = [1, 1]} : vector<16x96xbf16> to vector<16x32xbf16>
    %c0_5 = arith.constant 0 : index
    %c0_6 = arith.constant 0 : index
    %9 = vector.load %arg4[%c0_5, %c0_6] : memref<16x32xbf16, #tpu.memory_space<vmem>>, vector<16x32xbf16>
    tpu.vector_store %arg4[%c0_5, %c0_6], %8 {strides = array<i32>} : memref<16x32xbf16, #tpu.memory_space<vmem>>, vector<16x32xbf16>,
    %10 = vector.extract_strided_slice %7 {offsets = [0, 32], sizes = [16, 32], strides = [1, 1]} : vector<16x96xbf16> to vector<16x32xbf16>
    %c0_7 = arith.constant 0 : index
    %c0_8 = arith.constant 0 : index
    %11 = vector.load %arg5[%c0_7, %c0_8] : memref<16x32xbf16, #tpu.memory_space<vmem>>, vector<16x32xbf16>
    tpu.vector_store %arg5[%c0_7, %c0_8], %10 {strides = array<i32>} : memref<16x32xbf16, #tpu.memory_space<vmem>>, vector<16x32xbf16>,
    %12 = vector.extract_strided_slice %7 {offsets = [0, 64], sizes = [16, 32], strides = [1, 1]} : vector<16x96xbf16> to vector<16x32xbf16>
    %c0_9 = arith.constant 0 : index
    %c0_10 = arith.constant 0 : index
    %13 = vector.load %arg6[%c0_9, %c0_10] : memref<16x32xbf16, #tpu.memory_space<vmem>>, vector<16x32xbf16>
    tpu.vector_store %arg6[%c0_9, %c0_10], %12 {strides = array<i32>} : memref<16x32xbf16, #tpu.memory_space<vmem>>, vector<16x32xbf16>,
    return
  }
  func.func @transform_0(%arg0: i32) -> (i32, i32) {
    %c0_i32 = arith.constant 0 : i32
    %c0_i32_0 = arith.constant 0 : i32
    return %arg0, %c0_i32 : i32, i32
  }
  func.func @transform_1(%arg0: i32) -> (i32, i32) {
    %c0_i32 = arith.constant 0 : i32
    %c0_i32_0 = arith.constant 0 : i32
    %c0_i32_1 = arith.constant 0 : i32
    return %c0_i32, %c0_i32_0 : i32, i32
  }
  func.func @transform_2(%arg0: i32) -> (i32, i32) {
    %c0_i32 = arith.constant 0 : i32
    %c0_i32_0 = arith.constant 0 : i32
    %c0_i32_1 = arith.constant 0 : i32
    return %c0_i32, %c0_i32_0 : i32, i32
  }
  func.func @transform_3(%arg0: i32) -> (i32, i32) {
    %c0_i32 = arith.constant 0 : i32
    %c0_i32_0 = arith.constant 0 : i32
    return %arg0, %c0_i32 : i32, i32
  }
  func.func @transform_4(%arg0: i32) -> (i32, i32) {
    %c0_i32 = arith.constant 0 : i32
    %c0_i32_0 = arith.constant 0 : i32
    return %arg0, %c0_i32 : i32, i32
  }
  func.func @transform_5(%arg0: i32) -> (i32, i32) {
    %c0_i32 = arith.constant 0 : i32
    %c0_i32_0 = arith.constant 0 : i32
    return %arg0, %c0_i32 : i32, i32
  }
}

</mosaic_0001>

<llo_original>
// kernel: tpu_custom_call.1
$region0: #{tpu_custom_call.1}
  #allocation0 [shape = 'u32[]', space=smem, size = 0x4, offset = 0x4, fixed_abs, tag = 'smem constant byte address 0x4 - core index']
  #allocation1 [shape = 'u32[72,128]{1,0:T(1,128)}', space=vmem, size = 0x9000, scoped, tag = 'internal scratch']
  %s0 = inlined_call_operand.hbm [shape: f32[32,32], index: 0, kind: input, shape index: {}]
  %s1 = inlined_call_operand.hbm [shape: bf16[32,96], index: 1, kind: input, shape index: {}]
  %s2 = inlined_call_operand.vmem [shape: f32[1,96], index: 2, kind: input, shape index: {}]
  %s3 = inlined_call_operand.hbm [shape: bf16[32,32], index: 3, kind: output, shape index: {0}]
  %s4 = inlined_call_operand.hbm [shape: bf16[32,32], index: 4, kind: output, shape index: {1}]
  %s5 = inlined_call_operand.hbm [shape: bf16[32,32], index: 5, kind: output, shape index: {2}]
  %6 = xla_tuple %s3, %s4, %s5
  %s7 = sld [smem:[#allocation0]]
  $region69: #{tpu_custom_call.1} parent=0
    _
  %s9 = ssub.s32 1, %s7
  %s10 = scalar_select 0, %s9, %s7
  $region1: #{tpu_custom_call.1} parent=0
    #allocation2 [shape = 'u8[16384]{0}', space=vmem, size = 0x4000, scoped, tag = 'input window, operand 0']
    #allocation3 [shape = 's32[2]{0}', space=sflag, size = 0x8, scoped, tag = 'scoped memory for tpu_custom_call.1']
    #allocation4 [shape = 's32[2]{0}', space=sflag, size = 0x8, scoped, tag = 'scoped memory for tpu_custom_call.1']
    #allocation5 [shape = 'u8[8192]{0}', space=vmem, size = 0x2000, scoped, tag = 'input window, operand 1, single buffered']
    #allocation6 [shape = 's32[1]{0}', space=sflag, size = 0x4, scoped, tag = 'scoped memory for tpu_custom_call.1']
    #allocation7 [shape = 'u8[8192]{0}', space=vmem, size = 0x2000, scoped, tag = 'output window, operand 0']
    #allocation8 [shape = 'u8[8192]{0}', space=vmem, size = 0x2000, scoped, tag = 'output window, operand 1']
    #allocation9 [shape = 's32[2]{0}', space=sflag, size = 0x8, scoped, tag = 'scoped memory for tpu_custom_call.1']
    #allocation10 [shape = 'u8[8192]{0}', space=vmem, size = 0x2000, scoped, tag = 'output window, operand 2']
    %11 = vsyncpa [#allocation3], 0
    %s12 = scalar_lea.sflag [#allocation3], 1
    %13 = vsyncpa %s12, 0
    %14 = vsyncpa [#allocation6], 0
    %15 = vsyncpa [#allocation4], 0
    %s16 = scalar_lea.sflag [#allocation4], 1
    %17 = vsyncpa %s16, 0
    %18 = vsyncpa [#allocation9], 0
    %s19 = scalar_lea.sflag [#allocation9], 1
    %20 = vsyncpa %s19, 0
    loop: start=0, step=1, limit=4
    $region2: #{tpu_custom_call.1} parent=1 // loop_pre_header
      _
    $region3: #{tpu_custom_call.1} parent=1 // loop_header
      %s22 = sphi 0, %s26
      %p23 = scmp.ge.s32.totalorder %s22, 4
      %s32 = sphi 0, %s34
      %s35 = sphi 0, %s32
      %s36 = sphi 0, %s35
      %s52 = sphi 0, %s36
      %s56 = sphi 0, %s56
      %s58 = sphi 0, %s56
      %s59 = sphi 0, %s58
      %s73 = sphi 0, %s59
      %s77 = sphi 0, %s77
      %s79 = sphi 0, %s77
      %s80 = sphi 0, %s79
      %s94 = sphi 0, %s80
      %s100 = sphi 0, %s102
      %s103 = sphi 0, %s100
      %s104 = sphi 0, %s103
      %s120 = sphi 0, %s104
      %s126 = sphi 0, %s128
      %s129 = sphi 0, %s126
      %s130 = sphi 0, %s129
      %s146 = sphi 0, %s130
      %s152 = sphi 0, %s154
      %s155 = sphi 0, %s152
      %s156 = sphi 0, %s155
      %s172 = sphi 0, %s156
    $region4: #{tpu_custom_call.1} parent=1 // loop_header_branch
      %25 = sbr.rel (%p23) target = $region8
    $region5: #{tpu_custom_call.1} parent=1 // loop_body
      %s27 = ssub.s32 %s22, 1
      %s28 = ssub.s32 %s22, 2
      %s29 = sadd.s32 %s22, 1
      %s30 = ssub.s32 %s22, %s29
      %p31 = scmp.eq.s32.totalorder %s30, 0
      %s33 = sadd.s32 %s32, 1
      %s34 = scalar_select %p31, %s32, %s33
      %p37 = pneg %p31
      %p38 = scmp.eq.s32.totalorder %s22, 1
      %p39 = por %p37, %p38
      %p40 = scmp.ne.s32.totalorder %s32, %s35
      %p41 = scmp.eq.s32.totalorder %s22, 0
      %p42 = por %p40, %p41
      %p43 = scmp.ne.s32.totalorder %s32, %s35
      %p44 = scmp.eq.s32.totalorder %s27, 1
      %p45 = por %p43, %p44
      %p46 = scmp.ne.s32.totalorder %s35, %s36
      %p47 = scmp.eq.s32.totalorder %s27, 0
      %p48 = por %p46, %p47
      %p49 = scmp.ne.s32.totalorder %s35, %s36
      %p50 = scmp.eq.s32.totalorder %s28, 1
      %p51 = por %p49, %p50
      %p53 = scmp.ne.s32.totalorder %s36, %s52
      %p54 = scmp.eq.s32.totalorder %s28, 0
      %p55 = por %p53, %p54
      %s57 = sadd.s32 %s56, 1
      %p60 = scmp.eq.s32.totalorder %s22, 1
      %p61 = scmp.ne.s32.totalorder %s56, %s58
      %p62 = scmp.eq.s32.totalorder %s22, 0
      %p63 = por %p61, %p62
      %p64 = scmp.ne.s32.totalorder %s56, %s58
      %p65 = scmp.eq.s32.totalorder %s27, 1
      %p66 = por %p64, %p65
      %p67 = scmp.ne.s32.totalorder %s58, %s59
      %p68 = scmp.eq.s32.totalorder %s27, 0
      %p69 = por %p67, %p68
      %p70 = scmp.ne.s32.totalorder %s58, %s59
      %p71 = scmp.eq.s32.totalorder %s28, 1
      %p72 = por %p70, %p71
      %p74 = scmp.ne.s32.totalorder %s59, %s73
      %p75 = scmp.eq.s32.totalorder %s28, 0
      %p76 = por %p74, %p75
      %s78 = sadd.s32 %s77, 1
      %p81 = scmp.eq.s32.totalorder %s22, 1
      %p82 = scmp.ne.s32.totalorder %s77, %s79
      %p83 = scmp.eq.s32.totalorder %s22, 0
      %p84 = por %p82, %p83
      %p85 = scmp.ne.s32.totalorder %s77, %s79
      %p86 = scmp.eq.s32.totalorder %s27, 1
      %p87 = por %p85, %p86
      %p88 = scmp.ne.s32.totalorder %s79, %s80
      %p89 = scmp.eq.s32.totalorder %s27, 0
      %p90 = por %p88, %p89
      %p91 = scmp.ne.s32.totalorder %s79, %s80
      %p92 = scmp.eq.s32.totalorder %s28, 1
      %p93 = por %p91, %p92
      %p95 = scmp.ne.s32.totalorder %s80, %s94
      %p96 = scmp.eq.s32.totalorder %s28, 0
      %p97 = por %p95, %p96
      %s98 = ssub.s32 %s22, %s29
      %p99 = scmp.eq.s32.totalorder %s98, 0
      %s101 = sadd.s32 %s100, 1
      %s102 = scalar_select %p99, %s100, %s101
      %p105 = pneg %p99
      %p106 = scmp.eq.s32.totalorder %s22, 1
      %p107 = por %p105, %p106
      %p108 = scmp.ne.s32.totalorder %s100, %s103
      %p109 = scmp.eq.s32.totalorder %s22, 0
      %p110 = por %p108, %p109
      %p111 = scmp.ne.s32.totalorder %s100, %s103
      %p112 = scmp.eq.s32.totalorder %s27, 1
      %p113 = por %p111, %p112
      %p114 = scmp.ne.s32.totalorder %s103, %s104
      %p115 = scmp.eq.s32.totalorder %s27, 0
      %p116 = por %p114, %p115
      %p117 = scmp.ne.s32.totalorder %s103, %s104
      %p118 = scmp.eq.s32.totalorder %s28, 1
      %p119 = por %p117, %p118
      %p121 = scmp.ne.s32.totalorder %s104, %s120
      %p122 = scmp.eq.s32.totalorder %s28, 0
      %p123 = por %p121, %p122
      %s124 = ssub.s32 %s22, %s29
      %p125 = scmp.eq.s32.totalorder %s124, 0
      %s127 = sadd.s32 %s126, 1
      %s128 = scalar_select %p125, %s126, %s127
      %p131 = pneg %p125
      %p132 = scmp.eq.s32.totalorder %s22, 1
      %p133 = por %p131, %p132
      %p134 = scmp.ne.s32.totalorder %s126, %s129
      %p135 = scmp.eq.s32.totalorder %s22, 0
      %p136 = por %p134, %p135
      %p137 = scmp.ne.s32.totalorder %s126, %s129
      %p138 = scmp.eq.s32.totalorder %s27, 1
      %p139 = por %p137, %p138
      %p140 = scmp.ne.s32.totalorder %s129, %s130
      %p141 = scmp.eq.s32.totalorder %s27, 0
      %p142 = por %p140, %p141
      %p143 = scmp.ne.s32.totalorder %s129, %s130
      %p144 = scmp.eq.s32.totalorder %s28, 1
      %p145 = por %p143, %p144
      %p147 = scmp.ne.s32.totalorder %s130, %s146
      %p148 = scmp.eq.s32.totalorder %s28, 0
      %p149 = por %p147, %p148
      %s150 = ssub.s32 %s22, %s29
      %p151 = scmp.eq.s32.totalorder %s150, 0
      %s153 = sadd.s32 %s152, 1
      %s154 = scalar_select %p151, %s152, %s153
      %p157 = pneg %p151
      %p158 = scmp.eq.s32.totalorder %s22, 1
      %p159 = por %p157, %p158
      %p160 = scmp.ne.s32.totalorder %s152, %s155
      %p161 = scmp.eq.s32.totalorder %s22, 0
      %p162 = por %p160, %p161
      %p163 = scmp.ne.s32.totalorder %s152, %s155
      %p164 = scmp.eq.s32.totalorder %s27, 1
      %p165 = por %p163, %p164
      %p166 = scmp.ne.s32.totalorder %s155, %s156
      %p167 = scmp.eq.s32.totalorder %s27, 0
      %p168 = por %p166, %p167
      %p169 = scmp.ne.s32.totalorder %s155, %s156
      %p170 = scmp.eq.s32.totalorder %s28, 1
      %p171 = por %p169, %p170
      %p173 = scmp.ne.s32.totalorder %s156, %s172
      %p174 = scmp.eq.s32.totalorder %s28, 0
      %p175 = por %p173, %p174
      %p176 = scmp.le.s32.totalorder 1, %s22
      %p177 = scmp.lt.s32.totalorder %s22, 3
      %p178 = pnand %p176, %p177
      %p179 = pneg %p178
      // Predicated region
      $region9: #{tpu_custom_call.1} parent=5 // pred_check
        _
      $region10: #{tpu_custom_call.1} parent=5 // pred_check_branch
        %181 = sbr.rel (%p178) target = $region12
      $region11: #{tpu_custom_call.1} parent=5 // pred_region
        %s182 = ssub.s32 %s22, 1
        // Predicated region
        $region13: #{tpu_custom_call.1} parent=11 // pred_check
          %p183 = pneg %p69
        $region14: #{tpu_custom_call.1} parent=11 // pred_check_branch
          %185 = sbr.rel (%p183) target = $region16
        $region15: #{tpu_custom_call.1} parent=11 // pred_region
          %187 = vsyncadd [#allocation6], 0
          %s188 = sshll.u32 %s1, 4
          %s189 = int_to_ptr.hbm [resolvable:$true] %s188
          %s190 = sshll.u32 [#allocation5], 4
          %s191 = int_to_ptr.vmem [resolvable:$true] %s190
          %196 = dma.hbm_to_vmem [thread:$0]  %s189, 256, %s191, [#allocation6], 64, 64, 4
        $region16: #{tpu_custom_call.1} parent=11 // pred_fallthru
          _
        // Predicated region
        $region17: #{tpu_custom_call.1} parent=11 // pred_check
          %p197 = pneg %p90
        $region18: #{tpu_custom_call.1} parent=11 // pred_check_branch
          %199 = sbr.rel (%p197) target = $region20
        $region19: #{tpu_custom_call.1} parent=11 // pred_region
          _
        $region20: #{tpu_custom_call.1} parent=11 // pred_fallthru
          _
      $region12: #{tpu_custom_call.1} parent=5 // pred_fallthru
        _
      %p200 = scmp.lt.s32.totalorder %s22, 2
      // Predicated region
      $region21: #{tpu_custom_call.1} parent=5 // pred_check
        %p201 = pneg %p200
      $region22: #{tpu_custom_call.1} parent=5 // pred_check_branch
        %203 = sbr.rel (%p201) target = $region24
      $region23: #{tpu_custom_call.1} parent=5 // pred_region
        // Predicated region
        $region25: #{tpu_custom_call.1} parent=23 // pred_check
          %p204 = pneg %p42
        $region26: #{tpu_custom_call.1} parent=23 // pred_check_branch
          %206 = sbr.rel (%p204) target = $region28
        $region27: #{tpu_custom_call.1} parent=23 // pred_region
          %s207 = sand.u32 %s32, 1
          %s208 = scalar_lea.sflag [#allocation3], %s207
          %s209 = sand.u32 %s32, 1
          %s210 = smul.addr %s209, 16
          %s211 = scalar_lea.vmem [#allocation2], %s210
          %s212 = smul.u32 2, %s22
          %214 = vsyncadd %s208, 0
          %s215 = smul.addr %s212, 8
          %s216 = scalar_lea.hbm %s0, %s215
          %s217 = sshll.u32 %s216, 4
          %s218 = int_to_ptr.hbm [resolvable:$true] %s217
          %s219 = sshll.u32 %s211, 4
          %s220 = int_to_ptr.vmem [resolvable:$true] %s219
          %225 = dma.hbm_to_vmem [thread:$0]  %s218, 256, %s220, %s208, 128, 128, 8
        $region28: #{tpu_custom_call.1} parent=23 // pred_fallthru
          _
      $region24: #{tpu_custom_call.1} parent=5 // pred_fallthru
        _
      %p226 = scmp.le.s32.totalorder 1, %s22
      %p227 = scmp.lt.s32.totalorder %s22, 3
      %p228 = pnand %p226, %p227
      %p229 = pneg %p228
      // Predicated region
      $region29: #{tpu_custom_call.1} parent=5 // pred_check
        _
      $region30: #{tpu_custom_call.1} parent=5 // pred_check_branch
        %231 = sbr.rel (%p228) target = $region32
      $region31: #{tpu_custom_call.1} parent=5 // pred_region
        %s232 = ssub.s32 %s22, 1
        %s233 = sand.u32 %s35, 1
        %s234 = scalar_lea.sflag [#allocation3], %s233
        %s235 = sand.u32 %s35, 1
        %s236 = smul.addr %s235, 16
        %s237 = scalar_lea.vmem [#allocation2], %s236
        // Predicated region
        $region33: #{tpu_custom_call.1} parent=31 // pred_check
          %p238 = pneg %p48
        $region34: #{tpu_custom_call.1} parent=31 // pred_check_branch
          %240 = sbr.rel (%p238) target = $region36
        $region35: #{tpu_custom_call.1} parent=31 // pred_region
          %242 = dma.done %s234, 256
        $region36: #{tpu_custom_call.1} parent=31 // pred_fallthru
          _
        // Predicated region
        $region37: #{tpu_custom_call.1} parent=31 // pred_check
          %p243 = pneg %p69
        $region38: #{tpu_custom_call.1} parent=31 // pred_check_branch
          %245 = sbr.rel (%p243) target = $region40
        $region39: #{tpu_custom_call.1} parent=31 // pred_region
          %247 = dma.done [#allocation6], 256
        $region40: #{tpu_custom_call.1} parent=31 // pred_fallthru
          _
        %s248 = sand.u32 %s35, 1
        %s249 = scalar_lea.sflag [#allocation3], %s248
        %s250 = sand.u32 %s35, 1
        %s251 = smul.addr %s250, 16
        %s252 = scalar_lea.vmem [#allocation2], %s251
        %p253 = pneg %p48
        %p254 = pneg %p45
        %p255 = pneg %p69
        %p256 = pneg %p66
        %p257 = pneg %p90
        %p258 = pneg %p87
        %p259 = pneg %p116
        %p260 = pneg %p113
        %s261 = sand.u32 %s103, 1
        %s262 = scalar_lea.sflag [#allocation4], %s261
        %s263 = sand.u32 %s103, 1
        %s264 = smul.addr %s263, 8
        %s265 = scalar_lea.vmem [#allocation7], %s264
        %p266 = pneg %p142
        %p267 = pneg %p139
        %s268 = sand.u32 %s27, 1
        %s269 = scalar_lea.sflag [#allocation9], %s268
        %s270 = sand.u32 %s129, 1
        %s271 = smul.addr %s270, 8
        %s272 = scalar_lea.vmem [#allocation8], %s271
        %p273 = pneg %p168
        %p274 = pneg %p165
        %s275 = sand.u32 %s27, 1
        %s276 = scalar_lea.sflag [#allocation9], %s275
        %s277 = sand.u32 %s155, 1
        %s278 = smul.addr %s277, 8
        %s279 = scalar_lea.vmem [#allocation10], %s278
        %s280 = smul.u32 2, %s27
        %s281 = smul.u32 2, %s27
        %s282 = smul.u32 2, %s27
        %s283 = smul.u32 2, %s27
        %v285 = vld [vmem:[%s237] sm:$0xff]
        %v286 = vld [vmem:[%s237 + $0x8] sm:$0xff]
        %v287 = vpack.c.bf16 %v286, %v285
        %v288 = vld [vmem:[#allocation5] sm:$0xf]
        %v289 = vld [vmem:[#allocation5 + $0x4] sm:$0xf]
        %v290 = vld [vmem:[#allocation5 + $0x8] sm:$0xf]
        %v291 = vld [vmem:[#allocation5 + $0xc] sm:$0xf]
        %v292 = vld [vmem:[%s2] sm:$0x1]
        %v294 = vperm.slane %v292, 0
        %v300 = vunpack.c.l.b16 %v288
        %v301 = vunpack.c.l.b16 %v289
        %v302 = vunpack.c.l.b16 %v290
        %v303 = vunpack.c.l.b16 %v291
        %v304 = vpack.c.b16 %v301, %v300
        %v305 = vpack.c.b16 %v303, %v302
        %vm308 = vcmask 261120
        %v310 = vsel %vm308, %v287, 0
        %312 = vmatpush.bf16.msra.mxu0 0
        %313 = vmatpush.bf16.msra.mxu0 0
        %314 = vmatpush.bf16.msra.mxu0 0
        %315 = vmatpush.bf16.msra.mxu0 0
        %316 = vmatpush.bf16.msra.mxu0 0
        %317 = vmatpush.bf16.msra.mxu0 0
        %318 = vmatpush.bf16.msra.mxu0 %v305
        %319 = vmatpush.bf16.msra.mxu0 %v304
        %320 = vmatmul.bf16.gmra.mxu0 %v310
        %v321 = vpop.f32.mrf.mxu0
        %v322 = vadd.f32 %v294, %v321
        %v323 = vpop.f32.mrf.mxu0
        %v324 = vadd.f32 %v294, %v323
        %325 = vdwg.mxu0
        %v326 = vpack.c.bf16 %v322, %v322
        %v327 = vpack.c.bf16 %v324, %v324
        %vm328 = vcmask 257024
        %329 = vst.msk [vmem:[%s265] sm:$0xf] %vm328, %v326
        %330 = vst.msk [vmem:[%s265 + $0x4] sm:$0xf] %vm328, %v327
        %333 = vrot.lane.b32.xlu0 %v326, 96
        %v334 = vpop.permute.xlu0 %333
        %335 = vrot.lane.b32.xlu0 %v327, 96
        %v336 = vpop.permute.xlu0 %335
        %339 = vst.msk [vmem:[%s272] sm:$0xf] %vm328, %v334
        %340 = vst.msk [vmem:[%s272 + $0x4] sm:$0xf] %vm328, %v336
        %341 = vrot.lane.b32.xlu0 %v326, 64
        %v342 = vpop.permute.xlu0 %341
        %343 = vrot.lane.b32.xlu0 %v327, 64
        %v344 = vpop.permute.xlu0 %343
        %347 = vst.msk [vmem:[%s279] sm:$0xf] %vm328, %v342
        %348 = vst.msk [vmem:[%s279 + $0x4] sm:$0xf] %vm328, %v344
        %s349 = sand.u32 %s103, 1
        %s350 = scalar_lea.sflag [#allocation4], %s349
        %s351 = sand.u32 %s103, 1
        %s352 = smul.addr %s351, 8
        %s353 = scalar_lea.vmem [#allocation7], %s352
        %s354 = sand.u32 %s27, 1
        %s355 = scalar_lea.sflag [#allocation9], %s354
        %s356 = sand.u32 %s129, 1
        %s357 = smul.addr %s356, 8
        %s358 = scalar_lea.vmem [#allocation8], %s357
        %s359 = sand.u32 %s27, 1
        %s360 = scalar_lea.sflag [#allocation9], %s359
        %s361 = sand.u32 %s155, 1
        %s362 = smul.addr %s361, 8
        %s363 = scalar_lea.vmem [#allocation10], %s362
        // Predicated region
        $region41: #{tpu_custom_call.1} parent=31 // pred_check
          %p364 = pneg %p113
        $region42: #{tpu_custom_call.1} parent=31 // pred_check_branch
          %366 = sbr.rel (%p364) target = $region44
        $region43: #{tpu_custom_call.1} parent=31 // pred_region
          %s367 = smul.u32 2, %s27
          %369 = vsyncadd %s350, 0
          %s370 = smul.addr %s367, 4
          %s371 = scalar_lea.hbm %s3, %s370
          %s372 = sshll.u32 %s353, 4
          %s373 = int_to_ptr.vmem [resolvable:$true] %s372
          %s374 = sshll.u32 %s371, 4
          %s375 = int_to_ptr.hbm [resolvable:$true] %s374
          %380 = dma.vmem_to_hbm [thread:$0]  %s373, 128, %s375, %s350, 64, 64, 4
        $region44: #{tpu_custom_call.1} parent=31 // pred_fallthru
          _
        // Predicated region
        $region45: #{tpu_custom_call.1} parent=31 // pred_check
          %p381 = pneg %p139
        $region46: #{tpu_custom_call.1} parent=31 // pred_check_branch
          %383 = sbr.rel (%p381) target = $region48
        $region47: #{tpu_custom_call.1} parent=31 // pred_region
          %s384 = smul.u32 2, %s27
          %386 = vsyncadd %s355, 0
          %s387 = smul.addr %s384, 4
          %s388 = scalar_lea.hbm %s4, %s387
          %s389 = sshll.u32 %s358, 4
          %s390 = int_to_ptr.vmem [resolvable:$true] %s389
          %s391 = sshll.u32 %s388, 4
          %s392 = int_to_ptr.hbm [resolvable:$true] %s391
          %397 = dma.vmem_to_hbm [thread:$0]  %s390, 128, %s392, %s355, 64, 64, 4
        $region48: #{tpu_custom_call.1} parent=31 // pred_fallthru
          _
        // Predicated region
        $region49: #{tpu_custom_call.1} parent=31 // pred_check
          %p398 = pneg %p165
        $region50: #{tpu_custom_call.1} parent=31 // pred_check_branch
          %400 = sbr.rel (%p398) target = $region52
        $region51: #{tpu_custom_call.1} parent=31 // pred_region
          %s401 = smul.u32 2, %s27
          %403 = vsyncadd %s360, 0
          %s404 = smul.addr %s401, 4
          %s405 = scalar_lea.hbm %s5, %s404
          %s406 = sshll.u32 %s363, 4
          %s407 = int_to_ptr.vmem [resolvable:$true] %s406
          %s408 = sshll.u32 %s405, 4
          %s409 = int_to_ptr.hbm [resolvable:$true] %s408
          %414 = dma.vmem_to_hbm [thread:$0]  %s407, 128, %s409, %s360, 64, 64, 4
        $region52: #{tpu_custom_call.1} parent=31 // pred_fallthru
          _
      $region32: #{tpu_custom_call.1} parent=5 // pred_fallthru
        _
      %p415 = scmp.le.s32.totalorder 2, %s22
      // Predicated region
      $region53: #{tpu_custom_call.1} parent=5 // pred_check
        %p416 = pneg %p415
      $region54: #{tpu_custom_call.1} parent=5 // pred_check_branch
        %418 = sbr.rel (%p416) target = $region56
      $region55: #{tpu_custom_call.1} parent=5 // pred_region
        %s419 = ssub.s32 %s22, 2
        // Predicated region
        $region57: #{tpu_custom_call.1} parent=55 // pred_check
          %p420 = pneg %p119
        $region58: #{tpu_custom_call.1} parent=55 // pred_check_branch
          %422 = sbr.rel (%p420) target = $region60
        $region59: #{tpu_custom_call.1} parent=55 // pred_region
          %s423 = sand.u32 %s104, 1
          %s424 = scalar_lea.sflag [#allocation4], %s423
          %s425 = sand.u32 %s104, 1
          %s426 = smul.addr %s425, 8
          %s427 = scalar_lea.vmem [#allocation7], %s426
          %429 = dma.done %s424, 128
        $region60: #{tpu_custom_call.1} parent=55 // pred_fallthru
          _
        // Predicated region
        $region61: #{tpu_custom_call.1} parent=55 // pred_check
          %p430 = pneg %p145
        $region62: #{tpu_custom_call.1} parent=55 // pred_check_branch
          %432 = sbr.rel (%p430) target = $region64
        $region63: #{tpu_custom_call.1} parent=55 // pred_region
          %s433 = sand.u32 %s28, 1
          %s434 = scalar_lea.sflag [#allocation9], %s433
          %s435 = sand.u32 %s130, 1
          %s436 = smul.addr %s435, 8
          %s437 = scalar_lea.vmem [#allocation8], %s436
          %439 = dma.done %s434, 128
        $region64: #{tpu_custom_call.1} parent=55 // pred_fallthru
          _
        // Predicated region
        $region65: #{tpu_custom_call.1} parent=55 // pred_check
          %p440 = pneg %p171
        $region66: #{tpu_custom_call.1} parent=55 // pred_check_branch
          %442 = sbr.rel (%p440) target = $region68
        $region67: #{tpu_custom_call.1} parent=55 // pred_region
          %s443 = sand.u32 %s28, 1
          %s444 = scalar_lea.sflag [#allocation9], %s443
          %s445 = sand.u32 %s156, 1
          %s446 = smul.addr %s445, 8
          %s447 = scalar_lea.vmem [#allocation10], %s446
          %449 = dma.done %s444, 128
        $region68: #{tpu_custom_call.1} parent=55 // pred_fallthru
          _
      $region56: #{tpu_custom_call.1} parent=5 // pred_fallthru
        _
    $region6: #{tpu_custom_call.1} parent=1 // loop_footer
      %s26 = sadd.s32 1, %s22
    $region7: #{tpu_custom_call.1} parent=1 // loop_footer_branch
      %21 = sbr.rel target = $region3
    $region8: #{tpu_custom_call.1} parent=1 // loop_exit
      _
    %450 = vsyncpa [#allocation3], 1
    %s451 = scalar_lea.sflag [#allocation3], 1
    %452 = vsyncpa %s451, 1
    %453 = vsyncpa [#allocation6], 1
    %454 = vsyncpa [#allocation4], 1
    %s455 = scalar_lea.sflag [#allocation4], 1
    %456 = vsyncpa %s455, 1
    %457 = vsyncpa [#allocation9], 1
    %s458 = scalar_lea.sflag [#allocation9], 1
    %459 = vsyncpa %s458, 1

</llo_original>
